<compile_context>
chip_gen: v7x
topology: tpu7x:2x2x1
jax: 0.10.0
libtpu: 0.0.40
codegen_flags: <defaults>
</compile_context>

<pallas_src>
import jax
import jax.numpy as jnp
from jax import lax
from jax.experimental import pallas as pl
from jax.experimental.pallas import tpu as pltpu


def _se_block_kernel(x_ref, w1_ref, w2_ref, o_ref):
    """Fused SE block for a block of Bb batch elements (native NCHW layout).

    x_ref : (Bb, C, HW)  activations; HW on the lane axis, C on sublanes
    w1_ref: (Cr, C)      fc1 weight, PyTorch (out, in) layout, no bias
    w2_ref: (C, Cr)      fc2 weight, PyTorch (out, in) layout, no bias
    o_ref : (Bb, C, HW)  x * sigmoid(fc2(relu(fc1(mean_HW(x)))))
    """
    x = x_ref[...]                                                  # (Bb, C, HW)
    hw = x.shape[-1]

    # squeeze: global average pool over the spatial (lane) axis.
    # Explicit f32 accumulation so bf16 inputs don't lose precision over HW elems.
    pooled = jnp.sum(x.astype(jnp.float32), axis=-1) * (1.0 / hw)   # (Bb, C) f32

    # excitation MLP -- stays entirely in vregs/VMEM, never touches HBM.
    # Weights are used in PyTorch (out, in) layout: contract the in-feature axes.
    h = lax.dot_general(pooled, w1_ref[...].astype(jnp.float32),
                        (((1,), (1,)), ((), ())),
                        preferred_element_type=jnp.float32)         # (Bb, Cr)
    h = jnp.maximum(h, 0.0)                                         # ReLU
    g = lax.dot_general(h, w2_ref[...].astype(jnp.float32),
                        (((1,), (1,)), ((), ())),
                        preferred_element_type=jnp.float32)         # (Bb, C)
    gate = jax.nn.sigmoid(g).astype(x.dtype)                        # (Bb, C)

    # scale: per-(batch, channel) gate broadcast along the lane (spatial) axis.
    o_ref[...] = x * gate[:, :, None]                               # (Bb, C, HW)


def _pick_batch_block(batch, per_batch_bytes, target_bytes=2 << 20):
    """Largest divisor Bb of `batch` s.t. the block is ~target_bytes and, when
    batch >= 2, at least 2 grid steps remain (so both v7x TCs get work)."""
    if batch <= 1:
        return 1
    cap = max(1, min(batch // 2, target_bytes // max(per_batch_bytes, 1)))
    bb = 1
    for d in range(1, cap + 1):
        if batch % d == 0:
            bb = d
    return bb


def se_block(x_nchw, w1_oi, w2_oi, *, batch_block=None):
    """SEBlock forward.

    x_nchw: (B, C, H, W) in any float dtype (kept as-is; bf16 recommended)
    w1_oi : (C//r, C)  PyTorch nn.Linear weight layout (out, in), bias=False
    w2_oi : (C, C//r)  PyTorch nn.Linear weight layout (out, in), bias=False
    """
    B, C, H, W = x_nchw.shape
    HW = H * W
    Cr, Cin = w1_oi.shape
    assert Cin == C and w2_oi.shape == (C, Cr)

    # Free row-major view: NCHW -> (B, C, HW). No transpose, no extra HBM pass.
    x = x_nchw.reshape(B, C, HW)

    if batch_block is None:
        batch_block = _pick_batch_block(B, C * HW * x.dtype.itemsize)
    Bb = batch_block
    assert B % Bb == 0, (B, Bb)

    out = pl.pallas_call(
        _se_block_kernel,
        out_shape=jax.ShapeDtypeStruct((B, C, HW), x.dtype),
        grid=(B // Bb,),
        in_specs=[
            pl.BlockSpec((Bb, C, HW), lambda b: (b, 0, 0)),
            # Tiny weights: constant index maps -> fetched once, stay resident.
            pl.BlockSpec((Cr, C), lambda b: (0, 0)),
            pl.BlockSpec((C, Cr), lambda b: (0, 0)),
        ],
        out_specs=pl.BlockSpec((Bb, C, HW), lambda b: (b, 0, 0)),
        compiler_params=pltpu.CompilerParams(
            dimension_semantics=("parallel",)),
    )(x, w1_oi, w2_oi)

    return out.reshape(B, C, H, W)


def _se_block_reference(x_nchw, w1_oi, w2_oi):
    """Pure-JAX reference mirroring the PyTorch forward (for a sanity check)."""
    xf = x_nchw.astype(jnp.float32)
    y = jnp.mean(xf, axis=(2, 3))                          # adaptive_avg_pool2d(., 1)
    y = jnp.maximum(y @ w1_oi.astype(jnp.float32).T, 0.0)  # relu(fc1(y))
    y = jax.nn.sigmoid(y @ w2_oi.astype(jnp.float32).T)    # sigmoid(fc2(y))
    return xf * y[:, :, None, None]


if __name__ == "__main__":
    key = jax.random.PRNGKey(0)
    kx, k1, k2 = jax.random.split(key, 3)

    # SMALL shapes consistent with the module (reduction=16 needs C >= 16).
    # HW = 256 keeps the output last dim a multiple of 128 (lane-dense stores).
    B, C, H, W = 4, 128, 16, 16
    REDUCTION = 16
    Cr = C // REDUCTION                                     # = 8

    x = jax.random.normal(kx, (B, C, H, W), dtype=jnp.float32)
    # PyTorch nn.Linear weight layout: (out_features, in_features), bias=False.
    w1 = 0.2 * jax.random.normal(k1, (Cr, C), dtype=jnp.float32)
    w2 = 0.2 * jax.random.normal(k2, (C, Cr), dtype=jnp.float32)

    ref = _se_block_reference(x, w1, w2)

    # f32 path (matches PyTorch defaults)
    out = se_block(x, w1, w2)
    jax.block_until_ready(out)
    assert out.shape == (B, C, H, W), out.shape
    assert bool(jnp.all(jnp.isfinite(out)))
    assert bool(jnp.allclose(out, ref, atol=1e-4, rtol=1e-4)), \
        float(jnp.max(jnp.abs(out - ref)))

    # bf16 path (half the HBM bytes; kernel keeps caller dtype, f32 accumulation)
    xb = x.astype(jnp.bfloat16)
    out_b = se_block(xb, w1, w2)
    jax.block_until_ready(out_b)
    assert out_b.dtype == jnp.bfloat16
    ref_b = _se_block_reference(xb, w1, w2)
    assert bool(jnp.allclose(out_b.astype(jnp.float32), ref_b,
                             atol=5e-2, rtol=5e-2)), \
        float(jnp.max(jnp.abs(out_b.astype(jnp.float32) - ref_b)))

    print("KERNEL_OK")
</pallas_src>

<mosaic_0001>
module attributes {stable_mosaic.version = 11 : i64} {
  func.func @_se_block_kernel(%arg0: i32, %arg1: memref<2x128x256xf32, #tpu.memory_space<vmem>>, %arg2: memref<8x128xf32, #tpu.memory_space<vmem>>, %arg3: memref<128x8xf32, #tpu.memory_space<vmem>>, %arg4: memref<2x128x256xf32, #tpu.memory_space<vmem>>) attributes {dimension_semantics = [#tpu.dimension_semantics<parallel>], iteration_bounds = array<i64: 2>, scalar_prefetch = 0 : i64, scratch_operands = 0 : i64, tpu.core_type = #tpu.core_type<tc>, window_params = [{transform_indices = @transform_0, window_bounds = array<i64: 2, 128, 256>}, {pipeline_mode = #tpu.pipeline_mode<synchronous>, transform_indices = @transform_1, window_bounds = array<i64: 8, 128>}, {pipeline_mode = #tpu.pipeline_mode<synchronous>, transform_indices = @transform_2, window_bounds = array<i64: 128, 8>}, {transform_indices = @transform_3, window_bounds = array<i64: 2, 128, 256>}]} {
    %c0 = arith.constant 0 : index
    %c0_0 = arith.constant 0 : index
    %c0_1 = arith.constant 0 : index
    %0 = vector.load %arg1[%c0, %c0_0, %c0_1] : memref<2x128x256xf32, #tpu.memory_space<vmem>>, vector<2x128x256xf32>
    %cst = arith.constant dense<0.000000e+00> : vector<2x128xf32>
    %1 = vector.multi_reduction <add>, %0, %cst [2] : vector<2x128x256xf32> to vector<2x128xf32>
    %cst_2 = arith.constant 3.906250e-03 : f32
    %2 = vector.broadcast %cst_2 : f32 to vector<2x128xf32>
    %3 = arith.mulf %1, %2 : vector<2x128xf32>
    %c0_3 = arith.constant 0 : index
    %c0_4 = arith.constant 0 : index
    %4 = vector.load %arg2[%c0_3, %c0_4] : memref<8x128xf32, #tpu.memory_space<vmem>>, vector<8x128xf32>
    %cst_5 = arith.constant dense<0.000000e+00> : vector<2x8xf32>
    %5 = tpu.matmul %3, %4, %cst_5 {dimension_numbers = #tpu.dot_dimension_numbers<[1], [1], [0], [0], [0, 0, 1, 0], [], []>} : vector<2x128xf32>, vector<8x128xf32>, vector<2x8xf32> -> vector<2x8xf32>
    %cst_6 = arith.constant 0.000000e+00 : f32
    %6 = vector.broadcast %cst_6 : f32 to vector<2x8xf32>
    %7 = arith.maximumf %5, %6 : vector<2x8xf32>
    %c0_7 = arith.constant 0 : index
    %c0_8 = arith.constant 0 : index
    %8 = vector.load %arg3[%c0_7, %c0_8] : memref<128x8xf32, #tpu.memory_space<vmem>>, vector<128x8xf32>
    %cst_9 = arith.constant dense<0.000000e+00> : vector<2x128xf32>
    %9 = tpu.matmul %7, %8, %cst_9 {dimension_numbers = #tpu.dot_dimension_numbers<[1], [1], [0], [0], [0, 0, 1, 0], [], []>} : vector<2x8xf32>, vector<128x8xf32>, vector<2x128xf32> -> vector<2x128xf32>
    %10 = arith.negf %9 : vector<2x128xf32>
    %11 = math.exp %10 : vector<2x128xf32>
    %cst_10 = arith.constant 1.000000e+00 : f32
    %12 = vector.broadcast %cst_10 : f32 to vector<2x128xf32>
    %13 = arith.addf %12, %11 : vector<2x128xf32>
    %14 = arith.divf %12, %13 : vector<2x128xf32>
    %15 = vector.shape_cast %14 : vector<2x128xf32> to vector<2x128x1xf32>
    %16 = vector.broadcast %15 : vector<2x128x1xf32> to vector<2x128x256xf32>
    %17 = arith.mulf %0, %16 : vector<2x128x256xf32>
    %c0_11 = arith.constant 0 : index
    %c0_12 = arith.constant 0 : index
    %c0_13 = arith.constant 0 : index
    %18 = vector.load %arg4[%c0_11, %c0_12, %c0_13] : memref<2x128x256xf32, #tpu.memory_space<vmem>>, vector<2x128x256xf32>
    tpu.vector_store %arg4[%c0_11, %c0_12, %c0_13], %17 {strides = array<i32>} : memref<2x128x256xf32, #tpu.memory_space<vmem>>, vector<2x128x256xf32>,
    return
  }
  func.func @transform_0(%arg0: i32) -> (i32, i32, i32) {
    %c0_i32 = arith.constant 0 : i32
    %c0_i32_0 = arith.constant 0 : i32
    %c0_i32_1 = arith.constant 0 : i32
    return %arg0, %c0_i32, %c0_i32_0 : i32, i32, i32
  }
  func.func @transform_1(%arg0: i32) -> (i32, i32) {
    %c0_i32 = arith.constant 0 : i32
    %c0_i32_0 = arith.constant 0 : i32
    %c0_i32_1 = arith.constant 0 : i32
    return %c0_i32, %c0_i32_0 : i32, i32
  }
  func.func @transform_2(%arg0: i32) -> (i32, i32) {
    %c0_i32 = arith.constant 0 : i32
    %c0_i32_0 = arith.constant 0 : i32
    %c0_i32_1 = arith.constant 0 : i32
    return %c0_i32, %c0_i32_0 : i32, i32
  }
  func.func @transform_3(%arg0: i32) -> (i32, i32, i32) {
    %c0_i32 = arith.constant 0 : i32
    %c0_i32_0 = arith.constant 0 : i32
    %c0_i32_1 = arith.constant 0 : i32
    return %arg0, %c0_i32, %c0_i32_0 : i32, i32, i32
  }
}

</mosaic_0001>

<llo_original>
// kernel: tpu_custom_call.1
$region0: #{tpu_custom_call.1}
  #allocation0 [shape = 'u32[]', space=smem, size = 0x4, offset = 0x4, fixed_abs, tag = 'smem constant byte address 0x4 - core index']
  #allocation1 [shape = 'u32[144,128]{1,0:T(1,128)}', space=vmem, size = 0x12000, scoped, tag = 'internal scratch']
  %s0 = inlined_call_operand.hbm [shape: f32[4,128,256], index: 0, kind: input, shape index: {}]
  %s1 = inlined_call_operand.vmem [shape: f32[8,128], index: 1, kind: input, shape index: {}]
  %s2 = inlined_call_operand.vmem [shape: f32[128,8], index: 2, kind: input, shape index: {}]
  %s3 = inlined_call_operand.hbm [shape: f32[4,128,256], index: 3, kind: output, shape index: {}]
  %s4 = sld [smem:[#allocation0]]
  $region49: #{tpu_custom_call.1} parent=0
    _
  %s6 = ssub.s32 1, %s4
  %s7 = scalar_select 0, %s6, %s4
  $region1: #{tpu_custom_call.1} parent=0
    #allocation2 [shape = 'u8[524288]{0}', space=vmem, size = 0x80000, scoped, tag = 'input window, operand 0']
    #allocation3 [shape = 's32[2]{0}', space=sflag, size = 0x8, scoped, tag = 'scoped memory for tpu_custom_call.1']
    #allocation4 [shape = 's32[2]{0}', space=sflag, size = 0x8, scoped, tag = 'scoped memory for tpu_custom_call.1']
    #allocation5 [shape = 'u8[524288]{0}', space=vmem, size = 0x80000, scoped, tag = 'output window, operand 0']
    %8 = vsyncpa [#allocation3], 0
    %s9 = scalar_lea.sflag [#allocation3], 1
    %10 = vsyncpa %s9, 0
    %11 = vsyncpa [#allocation4], 0
    %s12 = scalar_lea.sflag [#allocation4], 1
    %13 = vsyncpa %s12, 0
    loop: start=0, step=1, limit=4
    $region2: #{tpu_custom_call.1} parent=1 // loop_pre_header
      _
    $region3: #{tpu_custom_call.1} parent=1 // loop_header
      %s15 = sphi 0, %s19
      %p16 = scmp.ge.s32.totalorder %s15, 4
      %s25 = sphi 0, %s27
      %s28 = sphi 0, %s25
      %s29 = sphi 0, %s28
      %s45 = sphi 0, %s29
      %s49 = sphi 0, %s49
      %s51 = sphi 0, %s49
      %s52 = sphi 0, %s51
      %s66 = sphi 0, %s52
      %s70 = sphi 0, %s70
      %s72 = sphi 0, %s70
      %s73 = sphi 0, %s72
      %s87 = sphi 0, %s73
      %s93 = sphi 0, %s95
      %s96 = sphi 0, %s93
      %s97 = sphi 0, %s96
      %s113 = sphi 0, %s97
    $region4: #{tpu_custom_call.1} parent=1 // loop_header_branch
      %18 = sbr.rel (%p16) target = $region8
    $region5: #{tpu_custom_call.1} parent=1 // loop_body
      %s20 = ssub.s32 %s15, 1
      %s21 = ssub.s32 %s15, 2
      %s22 = sadd.s32 %s15, 1
      %s23 = ssub.s32 %s15, %s22
      %p24 = scmp.eq.s32.totalorder %s23, 0
      %s26 = sadd.s32 %s25, 1
      %s27 = scalar_select %p24, %s25, %s26
      %p30 = pneg %p24
      %p31 = scmp.eq.s32.totalorder %s15, 1
      %p32 = por %p30, %p31
      %p33 = scmp.ne.s32.totalorder %s25, %s28
      %p34 = scmp.eq.s32.totalorder %s15, 0
      %p35 = por %p33, %p34
      %p36 = scmp.ne.s32.totalorder %s25, %s28
      %p37 = scmp.eq.s32.totalorder %s20, 1
      %p38 = por %p36, %p37
      %p39 = scmp.ne.s32.totalorder %s28, %s29
      %p40 = scmp.eq.s32.totalorder %s20, 0
      %p41 = por %p39, %p40
      %p42 = scmp.ne.s32.totalorder %s28, %s29
      %p43 = scmp.eq.s32.totalorder %s21, 1
      %p44 = por %p42, %p43
      %p46 = scmp.ne.s32.totalorder %s29, %s45
      %p47 = scmp.eq.s32.totalorder %s21, 0
      %p48 = por %p46, %p47
      %s50 = sadd.s32 %s49, 1
      %p53 = scmp.eq.s32.totalorder %s15, 1
      %p54 = scmp.ne.s32.totalorder %s49, %s51
      %p55 = scmp.eq.s32.totalorder %s15, 0
      %p56 = por %p54, %p55
      %p57 = scmp.ne.s32.totalorder %s49, %s51
      %p58 = scmp.eq.s32.totalorder %s20, 1
      %p59 = por %p57, %p58
      %p60 = scmp.ne.s32.totalorder %s51, %s52
      %p61 = scmp.eq.s32.totalorder %s20, 0
      %p62 = por %p60, %p61
      %p63 = scmp.ne.s32.totalorder %s51, %s52
      %p64 = scmp.eq.s32.totalorder %s21, 1
      %p65 = por %p63, %p64
      %p67 = scmp.ne.s32.totalorder %s52, %s66
      %p68 = scmp.eq.s32.totalorder %s21, 0
      %p69 = por %p67, %p68
      %s71 = sadd.s32 %s70, 1
      %p74 = scmp.eq.s32.totalorder %s15, 1
      %p75 = scmp.ne.s32.totalorder %s70, %s72
      %p76 = scmp.eq.s32.totalorder %s15, 0
      %p77 = por %p75, %p76
      %p78 = scmp.ne.s32.totalorder %s70, %s72
      %p79 = scmp.eq.s32.totalorder %s20, 1
      %p80 = por %p78, %p79
      %p81 = scmp.ne.s32.totalorder %s72, %s73
      %p82 = scmp.eq.s32.totalorder %s20, 0
      %p83 = por %p81, %p82
      %p84 = scmp.ne.s32.totalorder %s72, %s73
      %p85 = scmp.eq.s32.totalorder %s21, 1
      %p86 = por %p84, %p85
      %p88 = scmp.ne.s32.totalorder %s73, %s87
      %p89 = scmp.eq.s32.totalorder %s21, 0
      %p90 = por %p88, %p89
      %s91 = ssub.s32 %s15, %s22
      %p92 = scmp.eq.s32.totalorder %s91, 0
      %s94 = sadd.s32 %s93, 1
      %s95 = scalar_select %p92, %s93, %s94
      %p98 = pneg %p92
      %p99 = scmp.eq.s32.totalorder %s15, 1
      %p100 = por %p98, %p99
      %p101 = scmp.ne.s32.totalorder %s93, %s96
      %p102 = scmp.eq.s32.totalorder %s15, 0
      %p103 = por %p101, %p102
      %p104 = scmp.ne.s32.totalorder %s93, %s96
      %p105 = scmp.eq.s32.totalorder %s20, 1
      %p106 = por %p104, %p105
      %p107 = scmp.ne.s32.totalorder %s96, %s97
      %p108 = scmp.eq.s32.totalorder %s20, 0
      %p109 = por %p107, %p108
      %p110 = scmp.ne.s32.totalorder %s96, %s97
      %p111 = scmp.eq.s32.totalorder %s21, 1
      %p112 = por %p110, %p111
      %p114 = scmp.ne.s32.totalorder %s97, %s113
      %p115 = scmp.eq.s32.totalorder %s21, 0
      %p116 = por %p114, %p115
      %p117 = scmp.le.s32.totalorder 1, %s15
      %p118 = scmp.lt.s32.totalorder %s15, 3
      %p119 = pnand %p117, %p118
      %p120 = pneg %p119
      // Predicated region
      $region9: #{tpu_custom_call.1} parent=5 // pred_check
        _
      $region10: #{tpu_custom_call.1} parent=5 // pred_check_branch
        %122 = sbr.rel (%p119) target = $region12
      $region11: #{tpu_custom_call.1} parent=5 // pred_region
        %s123 = ssub.s32 %s15, 1
        // Predicated region
        $region13: #{tpu_custom_call.1} parent=11 // pred_check
          %p124 = pneg %p62
        $region14: #{tpu_custom_call.1} parent=11 // pred_check_branch
          %126 = sbr.rel (%p124) target = $region16
        $region15: #{tpu_custom_call.1} parent=11 // pred_region
          _
        $region16: #{tpu_custom_call.1} parent=11 // pred_fallthru
          _
        // Predicated region
        $region17: #{tpu_custom_call.1} parent=11 // pred_check
          %p127 = pneg %p83
        $region18: #{tpu_custom_call.1} parent=11 // pred_check_branch
          %129 = sbr.rel (%p127) target = $region20
        $region19: #{tpu_custom_call.1} parent=11 // pred_region
          _
        $region20: #{tpu_custom_call.1} parent=11 // pred_fallthru
          _
      $region12: #{tpu_custom_call.1} parent=5 // pred_fallthru
        _
      %p130 = scmp.lt.s32.totalorder %s15, 2
      // Predicated region
      $region21: #{tpu_custom_call.1} parent=5 // pred_check
        %p131 = pneg %p130
      $region22: #{tpu_custom_call.1} parent=5 // pred_check_branch
        %133 = sbr.rel (%p131) target = $region24
      $region23: #{tpu_custom_call.1} parent=5 // pred_region
        // Predicated region
        $region25: #{tpu_custom_call.1} parent=23 // pred_check
          %p134 = pneg %p35
        $region26: #{tpu_custom_call.1} parent=23 // pred_check_branch
          %136 = sbr.rel (%p134) target = $region28
        $region27: #{tpu_custom_call.1} parent=23 // pred_region
          %s137 = sand.u32 %s25, 1
          %s138 = scalar_lea.sflag [#allocation3], %s137
          %s139 = sand.u32 %s25, 1
          %s140 = smul.addr %s139, 512
          %s141 = scalar_lea.vmem [#allocation2], %s140
          %s142 = smul.u32 2, %s15
          %s144 = ssub.s32 8192, 8192
          %145 = vsyncadd %s138, %s144
          %s146 = smul.addr %s142, 32
          %s147 = smul.addr %s146, 128
          %s148 = scalar_lea.hbm %s0, %s147
          %s149 = sshll.u32 %s141, 4
          %s150 = int_to_ptr.vmem [resolvable:$true] %s149
          %155 = dma.hbm_to_vmem [thread:$0]  %s148, 8192, %s150, %s138, 256, 256, 16
        $region28: #{tpu_custom_call.1} parent=23 // pred_fallthru
          _
      $region24: #{tpu_custom_call.1} parent=5 // pred_fallthru
        _
      %p156 = scmp.le.s32.totalorder 1, %s15
      %p157 = scmp.lt.s32.totalorder %s15, 3
      %p158 = pnand %p156, %p157
      %p159 = pneg %p158
      // Predicated region
      $region29: #{tpu_custom_call.1} parent=5 // pred_check
        _
      $region30: #{tpu_custom_call.1} parent=5 // pred_check_branch
        %161 = sbr.rel (%p158) target = $region32
      $region31: #{tpu_custom_call.1} parent=5 // pred_region
        %s162 = ssub.s32 %s15, 1
        %s163 = sand.u32 %s28, 1
        %s164 = scalar_lea.sflag [#allocation3], %s163
        %s165 = sand.u32 %s28, 1
        %s166 = smul.addr %s165, 512
        %s167 = scalar_lea.vmem [#allocation2], %s166
        // Predicated region
        $region33: #{tpu_custom_call.1} parent=31 // pred_check
          %p168 = pneg %p41
        $region34: #{tpu_custom_call.1} parent=31 // pred_check_branch
          %170 = sbr.rel (%p168) target = $region36
        $region35: #{tpu_custom_call.1} parent=31 // pred_region
          %171 = dma.done %s164, 8192
        $region36: #{tpu_custom_call.1} parent=31 // pred_fallthru
          _
        %s172 = sand.u32 %s28, 1
        %s173 = scalar_lea.sflag [#allocation3], %s172
        %s174 = sand.u32 %s28, 1
        %s175 = smul.addr %s174, 512
        %s176 = scalar_lea.vmem [#allocation2], %s175
        %p177 = pneg %p41
        %p178 = pneg %p38
        %p179 = pneg %p62
        %p180 = pneg %p59
        %p181 = pneg %p83
        %p182 = pneg %p80
        %p183 = pneg %p109
        %p184 = pneg %p106
        %s185 = sand.u32 %s96, 1
        %s186 = scalar_lea.sflag [#allocation4], %s185
        %s187 = sand.u32 %s96, 1
        %s188 = smul.addr %s187, 512
        %s189 = scalar_lea.vmem [#allocation5], %s188
        %s190 = smul.u32 2, %s20
        %s191 = smul.u32 2, %s20
        %v192 = vld [vmem:[%s167] sm:$0xff]
        %v193 = vld [vmem:[%s167 + $0x8] sm:$0xff]
        %v194 = vld [vmem:[%s167 + $0x10] sm:$0xff]
        %v195 = vld [vmem:[%s167 + $0x18] sm:$0xff]
        %v196 = vld [vmem:[%s167 + $0x20] sm:$0xff]
        %v197 = vld [vmem:[%s167 + $0x28] sm:$0xff]
        %v198 = vld [vmem:[%s167 + $0x30] sm:$0xff]
        %v199 = vld [vmem:[%s167 + $0x38] sm:$0xff]
        %v200 = vld [vmem:[%s167 + $0x40] sm:$0xff]
        %v201 = vld [vmem:[%s167 + $0x48] sm:$0xff]
        %v202 = vld [vmem:[%s167 + $0x50] sm:$0xff]
        %v203 = vld [vmem:[%s167 + $0x58] sm:$0xff]
        %v204 = vld [vmem:[%s167 + $0x60] sm:$0xff]
        %v205 = vld [vmem:[%s167 + $0x68] sm:$0xff]
        %v206 = vld [vmem:[%s167 + $0x70] sm:$0xff]
        %v207 = vld [vmem:[%s167 + $0x78] sm:$0xff]
        %v208 = vld [vmem:[%s167 + $0x80] sm:$0xff]
        %v209 = vld [vmem:[%s167 + $0x88] sm:$0xff]
        %v210 = vld [vmem:[%s167 + $0x90] sm:$0xff]
        %v211 = vld [vmem:[%s167 + $0x98] sm:$0xff]
        %v212 = vld [vmem:[%s167 + $0xa0] sm:$0xff]
        %v213 = vld [vmem:[%s167 + $0xa8] sm:$0xff]
        %v214 = vld [vmem:[%s167 + $0xb0] sm:$0xff]
        %v215 = vld [vmem:[%s167 + $0xb8] sm:$0xff]
        %v216 = vld [vmem:[%s167 + $0xc0] sm:$0xff]
        %v217 = vld [vmem:[%s167 + $0xc8] sm:$0xff]
        %v218 = vld [vmem:[%s167 + $0xd0] sm:$0xff]
        %v219 = vld [vmem:[%s167 + $0xd8] sm:$0xff]
        %v220 = vld [vmem:[%s167 + $0xe0] sm:$0xff]
        %v221 = vld [vmem:[%s167 + $0xe8] sm:$0xff]
        %v222 = vld [vmem:[%s167 + $0xf0] sm:$0xff]
        %v223 = vld [vmem:[%s167 + $0xf8] sm:$0xff]
        %v224 = vld [vmem:[%s167 + $0x100] sm:$0xff]
        %v225 = vld [vmem:[%s167 + $0x108] sm:$0xff]
        %v226 = vld [vmem:[%s167 + $0x110] sm:$0xff]
        %v227 = vld [vmem:[%s167 + $0x118] sm:$0xff]
        %v228 = vld [vmem:[%s167 + $0x120] sm:$0xff]
        %v229 = vld [vmem:[%s167 + $0x128] sm:$0xff]
        %v230 = vld [vmem:[%s167 + $0x130] sm:$0xff]
        %v231 = vld [vmem:[%s167 + $0x138] sm:$0xff]
        %v232 = vld [vmem:[%s167 + $0x140] sm:$0xff]
        %v233 = vld [vmem:[%s167 + $0x148] sm:$0xff]
        %v234 = vld [vmem:[%s167 + $0x150] sm:$0xff]
        %v235 = vld [vmem:[%s167 + $0x158] sm:$0xff]
        %v236 = vld [vmem:[%s167 + $0x160] sm:$0xff]
        %v237 = vld [vmem:[%s167 + $0x168] sm:$0xff]
        %v238 = vld [vmem:[%s167 + $0x170] sm:$0xff]
        %v239 = vld [vmem:[%s167 + $0x178] sm:$0xff]
        %v240 = vld [vmem:[%s167 + $0x180] sm:$0xff]
        %v241 = vld [vmem:[%s167 + $0x188] sm:$0xff]
        %v242 = vld [vmem:[%s167 + $0x190] sm:$0xff]
        %v243 = vld [vmem:[%s167 + $0x198] sm:$0xff]
        %v244 = vld [vmem:[%s167 + $0x1a0] sm:$0xff]
        %v245 = vld [vmem:[%s167 + $0x1a8] sm:$0xff]
        %v246 = vld [vmem:[%s167 + $0x1b0] sm:$0xff]
        %v247 = vld [vmem:[%s167 + $0x1b8] sm:$0xff]
        %v248 = vld [vmem:[%s167 + $0x1c0] sm:$0xff]
        %v249 = vld [vmem:[%s167 + $0x1c8] sm:$0xff]
        %v250 = vld [vmem:[%s167 + $0x1d0] sm:$0xff]
        %v251 = vld [vmem:[%s167 + $0x1d8] sm:$0xff]
        %v252 = vld [vmem:[%s167 + $0x1e0] sm:$0xff]
        %v253 = vld [vmem:[%s167 + $0x1e8] sm:$0xff]
        %v254 = vld [vmem:[%s167 + $0x1f0] sm:$0xff]
        %v255 = vld [vmem:[%s167 + $0x1f8] sm:$0xff]
        %v256 = vadd.f32 %v192, %v193
        %257 = vadd.xlane.f32.xlu0 %v256
        %v258 = vpop.xlane.xlu0 %257
        %v259 = vadd.f32 %v194, %v195
        %260 = vadd.xlane.f32.xlu0 %v259
        %v261 = vpop.xlane.xlu0 %260
        %v262 = vadd.f32 %v196, %v197
        %263 = vadd.xlane.f32.xlu0 %v262
        %v264 = vpop.xlane.xlu0 %263
        %v265 = vadd.f32 %v198, %v199
        %266 = vadd.xlane.f32.xlu0 %v265
        %v267 = vpop.xlane.xlu0 %266
        %v268 = vadd.f32 %v200, %v201
        %269 = vadd.xlane.f32.xlu0 %v268
        %v270 = vpop.xlane.xlu0 %269
        %v271 = vadd.f32 %v202, %v203
        %272 = vadd.xlane.f32.xlu0 %v271
        %v273 = vpop.xlane.xlu0 %272
        %v274 = vadd.f32 %v204, %v205
        %275 = vadd.xlane.f32.xlu0 %v274
        %v276 = vpop.xlane.xlu0 %275
        %v277 = vadd.f32 %v206, %v207
        %278 = vadd.xlane.f32.xlu0 %v277
        %v279 = vpop.xlane.xlu0 %278
        %v280 = vadd.f32 %v208, %v209
        %281 = vadd.xlane.f32.xlu0 %v280
        %v282 = vpop.xlane.xlu0 %281
        %v283 = vadd.f32 %v210, %v211
        %284 = vadd.xlane.f32.xlu0 %v283
        %v285 = vpop.xlane.xlu0 %284
        %v286 = vadd.f32 %v212, %v213
        %287 = vadd.xlane.f32.xlu0 %v286
        %v288 = vpop.xlane.xlu0 %287
        %v289 = vadd.f32 %v214, %v215
        %290 = vadd.xlane.f32.xlu0 %v289
        %v291 = vpop.xlane.xlu0 %290
        %v292 = vadd.f32 %v216, %v217
        %293 = vadd.xlane.f32.xlu0 %v292
        %v294 = vpop.xlane.xlu0 %293
        %v295 = vadd.f32 %v218, %v219
        %296 = vadd.xlane.f32.xlu0 %v295
        %v297 = vpop.xlane.xlu0 %296
        %v298 = vadd.f32 %v220, %v221
        %299 = vadd.xlane.f32.xlu0 %v298
        %v300 = vpop.xlane.xlu0 %299
        %v301 = vadd.f32 %v222, %v223
        %302 = vadd.xlane.f32.xlu0 %v301
        %v303 = vpop.xlane.xlu0 %302
        %v304 = vadd.f32 %v224, %v225
        %305 = vadd.xlane.f32.xlu0 %v304
        %v306 = vpop.xlane.xlu0 %305
        %v307 = vadd.f32 %v226, %v227
        %308 = vadd.xlane.f32.xlu0 %v307
        %v309 = vpop.xlane.xlu0 %308
        %v310 = vadd.f32 %v228, %v229
        %311 = vadd.xlane.f32.xlu0 %v310
        %v312 = vpop.xlane.xlu0 %311
        %v313 = vadd.f32 %v230, %v231
        %314 = vadd.xlane.f32.xlu0 %v313
        %v315 = vpop.xlane.xlu0 %314
        %v316 = vadd.f32 %v232, %v233
        %317 = vadd.xlane.f32.xlu0 %v316
        %v318 = vpop.xlane.xlu0 %317
        %v319 = vadd.f32 %v234, %v235
        %320 = vadd.xlane.f32.xlu0 %v319
        %v321 = vpop.xlane.xlu0 %320
        %v322 = vadd.f32 %v236, %v237
        %323 = vadd.xlane.f32.xlu0 %v322
        %v324 = vpop.xlane.xlu0 %323
        %v325 = vadd.f32 %v238, %v239
        %326 = vadd.xlane.f32.xlu0 %v325
        %v327 = vpop.xlane.xlu0 %326
        %v328 = vadd.f32 %v240, %v241
        %329 = vadd.xlane.f32.xlu0 %v328
        %v330 = vpop.xlane.xlu0 %329
        %v331 = vadd.f32 %v242, %v243
        %332 = vadd.xlane.f32.xlu0 %v331
        %v333 = vpop.xlane.xlu0 %332
        %v334 = vadd.f32 %v244, %v245
        %335 = vadd.xlane.f32.xlu0 %v334
        %v336 = vpop.xlane.xlu0 %335
        %v337 = vadd.f32 %v246, %v247
        %338 = vadd.xlane.f32.xlu0 %v337
        %v339 = vpop.xlane.xlu0 %338
        %v340 = vadd.f32 %v248, %v249
        %341 = vadd.xlane.f32.xlu0 %v340
        %v342 = vpop.xlane.xlu0 %341
        %v343 = vadd.f32 %v250, %v251
        %344 = vadd.xlane.f32.xlu0 %v343
        %v345 = vpop.xlane.xlu0 %344
        %v346 = vadd.f32 %v252, %v253
        %347 = vadd.xlane.f32.xlu0 %v346
        %v348 = vpop.xlane.xlu0 %347
        %v349 = vadd.f32 %v254, %v255
        %350 = vadd.xlane.f32.xlu0 %v349
        %v351 = vpop.xlane.xlu0 %350
        %v352 = vmul.f32 %v258, 0.00390625
        %v353 = vmul.f32 %v261, 0.00390625
        %v354 = vmul.f32 %v264, 0.00390625
        %v355 = vmul.f32 %v267, 0.00390625
        %v356 = vmul.f32 %v270, 0.00390625
        %v357 = vmul.f32 %v273, 0.00390625
        %v358 = vmul.f32 %v276, 0.00390625
        %v359 = vmul.f32 %v279, 0.00390625
        %v360 = vmul.f32 %v282, 0.00390625
        %v361 = vmul.f32 %v285, 0.00390625
        %v362 = vmul.f32 %v288, 0.00390625
        %v363 = vmul.f32 %v291, 0.00390625
        %v364 = vmul.f32 %v294, 0.00390625
        %v365 = vmul.f32 %v297, 0.00390625
        %v366 = vmul.f32 %v300, 0.00390625
        %v367 = vmul.f32 %v303, 0.00390625
        %v368 = vmul.f32 %v306, 0.00390625
        %v369 = vmul.f32 %v309, 0.00390625
        %v370 = vmul.f32 %v312, 0.00390625
        %v371 = vmul.f32 %v315, 0.00390625
        %v372 = vmul.f32 %v318, 0.00390625
        %v373 = vmul.f32 %v321, 0.00390625
        %v374 = vmul.f32 %v324, 0.00390625
        %v375 = vmul.f32 %v327, 0.00390625
        %v376 = vmul.f32 %v330, 0.00390625
        %v377 = vmul.f32 %v333, 0.00390625
        %v378 = vmul.f32 %v336, 0.00390625
        %v379 = vmul.f32 %v339, 0.00390625
        %v380 = vmul.f32 %v342, 0.00390625
        %v381 = vmul.f32 %v345, 0.00390625
        %v382 = vmul.f32 %v348, 0.00390625
        %v383 = vmul.f32 %v351, 0.00390625
        %v384 = vld [vmem:[%s1] sm:$0xff]
        %v417 = vlaneseq
        %v418 = vand.u32 %v417, 127
        %v419 = vlaneseq
        %v420 = vshrl.u32 %v419, 7
        %v421 = vsub.s32 %v418, %v420
        %v422 = vrot.slane %v352, %v421
        %v423 = vadd.s32 %v418, 4294967288
        %v424 = vlaneseq
        %v425 = vshrl.u32 %v424, 7
        %v426 = vsub.s32 %v423, %v425
        %v427 = vrot.slane %v353, %v426
        %vm428 = vcmask 130112
        %v429 = vsel %vm428, %v427, %v422
        %v430 = vadd.s32 %v418, 4294967280
        %v431 = vlaneseq
        %v432 = vshrl.u32 %v431, 7
        %v433 = vsub.s32 %v430, %v432
        %v434 = vrot.slane %v354, %v433
        %vm435 = vcmask 195712
        %v436 = vsel %vm435, %v434, %v429
        %v437 = vadd.s32 %v418, 4294967272
        %v438 = vlaneseq
        %v439 = vshrl.u32 %v438, 7
        %v440 = vsub.s32 %v437, %v439
        %v441 = vrot.slane %v355, %v440
        %vm442 = vcmask 261312
        %v443 = vsel %vm442, %v441, %v436
        %v444 = vadd.s32 %v418, 4294967264
        %v445 = vlaneseq
        %v446 = vshrl.u32 %v445, 7
        %v447 = vsub.s32 %v444, %v446
        %v448 = vrot.slane %v356, %v447
        %vm449 = vcmask 326912
        %v450 = vsel %vm449, %v448, %v443
        %v451 = vadd.s32 %v418, 4294967256
        %v452 = vlaneseq
        %v453 = vshrl.u32 %v452, 7
        %v454 = vsub.s32 %v451, %v453
        %v455 = vrot.slane %v357, %v454
        %vm456 = vcmask 392512
        %v457 = vsel %vm456, %v455, %v450
        %v458 = vadd.s32 %v418, 4294967248
        %v459 = vlaneseq
        %v460 = vshrl.u32 %v459, 7
        %v461 = vsub.s32 %v458, %v460
        %v462 = vrot.slane %v358, %v461
        %vm463 = vcmask 458112
        %v464 = vsel %vm463, %v462, %v457
        %v465 = vadd.s32 %v418, 4294967240
        %v466 = vlaneseq
        %v467 = vshrl.u32 %v466, 7
        %v468 = vsub.s32 %v465, %v467
        %v469 = vrot.slane %v359, %v468
        %vm470 = vcmask 523712
        %v471 = vsel %vm470, %v469, %v464
        %v472 = vadd.s32 %v418, 4294967232
        %v473 = vlaneseq
        %v474 = vshrl.u32 %v473, 7
        %v475 = vsub.s32 %v472, %v474
        %v476 = vrot.slane %v360, %v475
        %vm477 = vcmask 589312
        %v478 = vsel %vm477, %v476, %v471
        %v479 = vadd.s32 %v418, 4294967224
        %v480 = vlaneseq
        %v481 = vshrl.u32 %v480, 7
        %v482 = vsub.s32 %v479, %v481
        %v483 = vrot.slane %v361, %v482
        %vm484 = vcmask 654912
        %v485 = vsel %vm484, %v483, %v478
        %v486 = vadd.s32 %v418, 4294967216
        %v487 = vlaneseq
        %v488 = vshrl.u32 %v487, 7
        %v489 = vsub.s32 %v486, %v488
        %v490 = vrot.slane %v362, %v489
        %vm491 = vcmask 720512
        %v492 = vsel %vm491, %v490, %v485
        %v493 = vadd.s32 %v418, 4294967208
        %v494 = vlaneseq
        %v495 = vshrl.u32 %v494, 7
        %v496 = vsub.s32 %v493, %v495
        %v497 = vrot.slane %v363, %v496
        %vm498 = vcmask 786112
        %v499 = vsel %vm498, %v497, %v492
        %v500 = vadd.s32 %v418, 4294967200
        %v501 = vlaneseq
        %v502 = vshrl.u32 %v501, 7
        %v503 = vsub.s32 %v500, %v502
        %v504 = vrot.slane %v364, %v503
        %vm505 = vcmask 851712
        %v506 = vsel %vm505, %v504, %v499
        %v507 = vadd.s32 %v418, 4294967192
        %v508 = vlaneseq
        %v509 = vshrl.u32 %v508, 7
        %v510 = vsub.s32 %v507, %v509
        %v511 = vrot.slane %v365, %v510
        %vm512 = vcmask 917312
        %v513 = vsel %vm512, %v511, %v506
        %v514 = vadd.s32 %v418, 4294967184
        %v515 = vlaneseq
        %v516 = vshrl.u32 %v515, 7
        %v517 = vsub.s32 %v514, %v516
        %v518 = vrot.slane %v366, %v517
        %vm519 = vcmask 982912
        %v520 = vsel %vm519, %v518, %v513
        %v521 = vadd.s32 %v418, 4294967176
        %v522 = vlaneseq
        %v523 = vshrl.u32 %v522, 7
        %v524 = vsub.s32 %v521, %v523
        %v525 = vrot.slane %v367, %v524
        %vm526 = vcmask 1048512
        %v527 = vsel %vm526, %v525, %v520
        %v528 = vlaneseq
        %v529 = vshrl.u32 %v528, 7
        %v530 = vsub.s32 %v418, %v529
        %v531 = vrot.slane %v368, %v530
        %v532 = vlaneseq
        %v533 = vshrl.u32 %v532, 7
        %v534 = vsub.s32 %v423, %v533
        %v535 = vrot.slane %v369, %v534
        %v536 = vsel %vm428, %v535, %v531
        %v537 = vlaneseq
        %v538 = vshrl.u32 %v537, 7
        %v539 = vsub.s32 %v430, %v538
        %v540 = vrot.slane %v370, %v539
        %v541 = vsel %vm435, %v540, %v536
        %v542 = vlaneseq
        %v543 = vshrl.u32 %v542, 7
        %v544 = vsub.s32 %v437, %v543
        %v545 = vrot.slane %v371, %v544
        %v546 = vsel %vm442, %v545, %v541
        %v547 = vlaneseq
        %v548 = vshrl.u32 %v547, 7
        %v549 = vsub.s32 %v444, %v548
        %v550 = vrot.slane %v372, %v549
        %v551 = vsel %vm449, %v550, %v546
        %v552 = vlaneseq
        %v553 = vshrl.u32 %v552, 7
        %v554 = vsub.s32 %v451, %v553
        %v555 = vrot.slane %v373, %v554
        %v556 = vsel %vm456, %v555, %v551
        %v557 = vlaneseq
        %v558 = vshrl.u32 %v557, 7
        %v559 = vsub.s32 %v458, %v558
        %v560 = vrot.slane %v374, %v559
        %v561 = vsel %vm463, %v560, %v556
        %v562 = vlaneseq
        %v563 = vshrl.u32 %v562, 7
        %v564 = vsub.s32 %v465, %v563
        %v565 = vrot.slane %v375, %v564
        %v566 = vsel %vm470, %v565, %v561
        %v567 = vlaneseq
        %v568 = vshrl.u32 %v567, 7
        %v569 = vsub.s32 %v472, %v568
        %v570 = vrot.slane %v376, %v569
        %v571 = vsel %vm477, %v570, %v566
        %v572 = vlaneseq
        %v573 = vshrl.u32 %v572, 7
        %v574 = vsub.s32 %v479, %v573
        %v575 = vrot.slane %v377, %v574
        %v576 = vsel %vm484, %v575, %v571
        %v577 = vlaneseq
        %v578 = vshrl.u32 %v577, 7
        %v579 = vsub.s32 %v486, %v578
        %v580 = vrot.slane %v378, %v579
        %v581 = vsel %vm491, %v580, %v576
        %v582 = vlaneseq
        %v583 = vshrl.u32 %v582, 7
        %v584 = vsub.s32 %v493, %v583
        %v585 = vrot.slane %v379, %v584
        %v586 = vsel %vm498, %v585, %v581
        %v587 = vlaneseq
        %v588 = vshrl.u32 %v587, 7
        %v589 = vsub.s32 %v500, %v588
        %v590 = vrot.slane %v380, %v589
        %v591 = vsel %vm505, %v590, %v586
        %v592 = vlaneseq
        %v593 = vshrl.u32 %v592, 7
        %v594 = vsub.s32 %v507, %v593
        %v595 = vrot.slane %v381, %v594
        %v596 = vsel %vm512, %v595, %v591
        %v597 = vlaneseq
        %v598 = vshrl.u32 %v597, 7
        %v599 = vsub.s32 %v514, %v598
        %v600 = vrot.slane %v382, %v599
        %v601 = vsel %vm519, %v600, %v596
        %v602 = vlaneseq
        %v603 = vshrl.u32 %v602, 7
        %v604 = vsub.s32 %v521, %v603
        %v605 = vrot.slane %v383, %v604
        %v606 = vsel %vm526, %v605, %v601
        %vm607 = vcmask 1041409
        %v608 = vsel %vm607, %v606, %v527
        %610 = vmatprep.subr.mxu0 0.0
        %611 = vmatpush1.xpose.msra.mxu0 %v384
        %612 = vmatprep.subr.mxu0 0.0
        %613 = vmatpush1.xpose.msra.mxu0 0.0
        %614 = vmatprep.subr.mxu0 0.0
        %615 = vmatpush1.xpose.msra.mxu0 0.0
        %616 = vmatprep.subr.mxu0 0.0
        %617 = vmatpush1.xpose.msra.mxu0 0.0
        %618 = vmatprep.subr.mxu0 0.0
        %619 = vmatpush1.xpose.msra.mxu0 0.0
        %620 = vmatprep.subr.mxu0 0.0
        %621 = vmatpush1.xpose.msra.mxu0 0.0
        %622 = vmatprep.subr.mxu0 0.0
        %623 = vmatpush1.xpose.msra.mxu0 0.0
        %624 = vmatprep.subr.mxu0 0.0
        %625 = vmatpush1.xpose.msra.mxu0 0.0
        %626 = vmatprep.subr.mxu0 0.0
        %627 = vmatpush1.xpose.msra.mxu0 0.0
        %628 = vmatprep.subr.mxu0 0.0
        %629 = vmatpush1.xpose.msra.mxu0 0.0
        %630 = vmatprep.subr.mxu0 0.0
        %631 = vmatpush1.xpose.msra.mxu0 0.0
        %632 = vmatprep.subr.mxu0 0.0
        %633 = vmatpush1.xpose.msra.mxu0 0.0
        %634 = vmatprep.subr.mxu0 0.0
        %635 = vmatpush1.xpose.msra.mxu0 0.0
        %636 = vmatprep.subr.mxu0 0.0
        %637 = vmatpush1.xpose.msra.mxu0 0.0
        %638 = vmatprep.subr.mxu0 0.0
        %639 = vmatpush1.xpose.msra.mxu0 0.0
        %640 = vmatprep.subr.mxu0 0.0
        %641 = vmatpush1.xpose.msra.mxu0 0.0
        %642 = vmatprep.subr.mxu0 0.0
        %643 = vmatpush1.xpose.msra.mxu0 0.0
        %644 = vmatprep.subr.mxu0 0.0
        %645 = vmatpush1.xpose.msra.mxu0 0.0
        %646 = vmatprep.subr.mxu0 0.0
        %647 = vmatpush1.xpose.msra.mxu0 0.0
        %648 = vmatprep.subr.mxu0 0.0
        %649 = vmatpush1.xpose.msra.mxu0 0.0
        %650 = vmatprep.subr.mxu0 0.0
        %651 = vmatpush1.xpose.msra.mxu0 0.0
        %652 = vmatprep.subr.mxu0 0.0
        %653 = vmatpush1.xpose.msra.mxu0 0.0
        %654 = vmatprep.subr.mxu0 0.0
        %655 = vmatpush1.xpose.msra.mxu0 0.0
        %656 = vmatprep.subr.mxu0 0.0
        %657 = vmatpush1.xpose.msra.mxu0 0.0
        %658 = vmatprep.subr.mxu0 0.0
        %659 = vmatpush1.xpose.msra.mxu0 0.0
        %660 = vmatprep.subr.mxu0 0.0
        %661 = vmatpush1.xpose.msra.mxu0 0.0
        %662 = vmatprep.subr.mxu0 0.0
        %663 = vmatpush1.xpose.msra.mxu0 0.0
        %664 = vmatprep.subr.mxu0 0.0
        %665 = vmatpush1.xpose.msra.mxu0 0.0
        %666 = vmatprep.subr.mxu0 0.0
        %667 = vmatpush1.xpose.msra.mxu0 0.0
        %668 = vmatprep.subr.mxu0 0.0
        %669 = vmatpush1.xpose.msra.mxu0 0.0
        %670 = vmatprep.subr.mxu0 0.0
        %671 = vmatpush1.xpose.msra.mxu0 0.0
        %672 = vmatprep.subr.mxu0 0.0
        %673 = vmatpush1.xpose.msra.mxu0 0.0
        %674 = vmatprep.mubr.f32.mxu0 0.0
        %675 = vmatmul.mubr.f32.gmra.mrb[0].mxu0 %v608
        %v676 = vpop.f32.mrb[0].mxu0
        %v677 = vadd.f32 0.0, %v676
        %v678 = vpop.f32.mrb[0].mxu0
        %679 = vdwg.mxu0
        %v680 = vmax.f32 %v677, 0.0
        %v681 = vld [vmem:[%s2] sm:$0xff]
        %v682 = vld [vmem:[%s2 + $0x8] sm:$0xff]
        %v683 = vld [vmem:[%s2 + $0x10] sm:$0xff]
        %v684 = vld [vmem:[%s2 + $0x18] sm:$0xff]
        %v685 = vld [vmem:[%s2 + $0x20] sm:$0xff]
        %v686 = vld [vmem:[%s2 + $0x28] sm:$0xff]
        %v687 = vld [vmem:[%s2 + $0x30] sm:$0xff]
        %v688 = vld [vmem:[%s2 + $0x38] sm:$0xff]
        %v689 = vld [vmem:[%s2 + $0x40] sm:$0xff]
        %v690 = vld [vmem:[%s2 + $0x48] sm:$0xff]
        %v691 = vld [vmem:[%s2 + $0x50] sm:$0xff]
        %v692 = vld [vmem:[%s2 + $0x58] sm:$0xff]
        %v693 = vld [vmem:[%s2 + $0x60] sm:$0xff]
        %v694 = vld [vmem:[%s2 + $0x68] sm:$0xff]
        %v695 = vld [vmem:[%s2 + $0x70] sm:$0xff]
        %v696 = vld [vmem:[%s2 + $0x78] sm:$0xff]
        %vm697 = vcmask 64512
        %v699 = vsel %vm697, %v680, 0
        %v702 = vsel %vm697, %v681, 0
        %v705 = vsel %vm697, %v682, 0
        %v708 = vsel %vm697, %v683, 0
        %v711 = vsel %vm697, %v684, 0
        %v714 = vsel %vm697, %v685, 0
        %v717 = vsel %vm697, %v686, 0
        %v720 = vsel %vm697, %v687, 0
        %v723 = vsel %vm697, %v688, 0
        %v726 = vsel %vm697, %v689, 0
        %v729 = vsel %vm697, %v690, 0
        %v732 = vsel %vm697, %v691, 0
        %v735 = vsel %vm697, %v692, 0
        %v738 = vsel %vm697, %v693, 0
        %v741 = vsel %vm697, %v694, 0
        %v744 = vsel %vm697, %v695, 0
        %v747 = vsel %vm697, %v696, 0
        %749 = vmatprep.subr.mxu0 0.0
        %750 = vmatpush1.xpose.msra.mxu0 %v702
        %751 = vmatprep.subr.mxu0 0.0
        %752 = vmatpush1.xpose.msra.mxu0 %v705
        %753 = vmatprep.subr.mxu0 0.0
        %754 = vmatpush1.xpose.msra.mxu0 %v708
        %755 = vmatprep.subr.mxu0 0.0
        %756 = vmatpush1.xpose.msra.mxu0 %v711
        %757 = vmatprep.subr.mxu0 0.0
        %758 = vmatpush1.xpose.msra.mxu0 %v714
        %759 = vmatprep.subr.mxu0 0.0
        %760 = vmatpush1.xpose.msra.mxu0 %v717
        %761 = vmatprep.subr.mxu0 0.0
        %762 = vmatpush1.xpose.msra.mxu0 %v720
        %763 = vmatprep.subr.mxu0 0.0
        %764 = vmatpush1.xpose.msra.mxu0 %v723
        %765 = vmatprep.subr.mxu0 0.0
        %766 = vmatpush1.xpose.msra.mxu0 %v726
        %767 = vmatprep.subr.mxu0 0.0
        %768 = vmatpush1.xpose.msra.mxu0 %v729
        %769 = vmatprep.subr.mxu0 0.0
        %770 = vmatpush1.xpose.msra.mxu0 %v732
        %771 = vmatprep.subr.mxu0 0.0
        %772 = vmatpush1.xpose.msra.mxu0 %v735
        %773 = vmatprep.subr.mxu0 0.0
        %774 = vmatpush1.xpose.msra.mxu0 %v738
        %775 = vmatprep.subr.mxu0 0.0
        %776 = vmatpush1.xpose.msra.mxu0 %v741
        %777 = vmatprep.subr.mxu0 0.0
        %778 = vmatpush1.xpose.msra.mxu0 %v744
        %779 = vmatprep.subr.mxu0 0.0
        %780 = vmatpush1.xpose.msra.mxu0 %v747
        %781 = vmatprep.subr.mxu0 0.0
        %782 = vmatpush1.xpose.msra.mxu0 0.0
        %783 = vmatprep.subr.mxu0 0.0
        %784 = vmatpush1.xpose.msra.mxu0 0.0
        %785 = vmatprep.subr.mxu0 0.0
        %786 = vmatpush1.xpose.msra.mxu0 0.0
        %787 = vmatprep.subr.mxu0 0.0
        %788 = vmatpush1.xpose.msra.mxu0 0.0
        %789 = vmatprep.subr.mxu0 0.0
        %790 = vmatpush1.xpose.msra.mxu0 0.0
        %791 = vmatprep.subr.mxu0 0.0
        %792 = vmatpush1.xpose.msra.mxu0 0.0
        %793 = vmatprep.subr.mxu0 0.0
        %794 = vmatpush1.xpose.msra.mxu0 0.0
        %795 = vmatprep.subr.mxu0 0.0
        %796 = vmatpush1.xpose.msra.mxu0 0.0
        %797 = vmatprep.subr.mxu0 0.0
        %798 = vmatpush1.xpose.msra.mxu0 0.0
        %799 = vmatprep.subr.mxu0 0.0
        %800 = vmatpush1.xpose.msra.mxu0 0.0
        %801 = vmatprep.subr.mxu0 0.0
        %802 = vmatpush1.xpose.msra.mxu0 0.0
        %803 = vmatprep.subr.mxu0 0.0
        %804 = vmatpush1.xpose.msra.mxu0 0.0
        %805 = vmatprep.subr.mxu0 0.0
        %806 = vmatpush1.xpose.msra.mxu0 0.0
        %807 = vmatprep.subr.mxu0 0.0
        %808 = vmatpush1.xpose.msra.mxu0 0.0
        %809 = vmatprep.subr.mxu0 0.0
        %810 = vmatpush1.xpose.msra.mxu0 0.0
        %811 = vmatprep.subr.mxu0 0.0
        %812 = vmatpush1.xpose.msra.mxu0 0.0
        %813 = vmatprep.mubr.f32.mxu0 0.0
        %814 = vmatmul.mubr.f32.gmra.mrb[0].mxu0 %v699
        %v815 = vpop.f32.mrb[0].mxu0
        %v816 = vadd.f32 0.0, %v815
        %v817 = vpop.f32.mrb[0].mxu0
        %818 = vdwg.mxu0
        %v819 = vxor.u32 %v816, 2147483648
        %v820 = vmul.f32 %v819, 1.442695
        %v821 = vpow.pop %v820
        %v822 = vadd.f32 %v821, 1.0
        %v823 = vrcp.pop %v822
        %v824 = vmul.f32 1.0, %v823
        %v825 = vlaneseq
        %v826 = vshrl.u32 %v825, 7
        %v827 = vsub.s32 0, %v826
        %v828 = vrot.slane %v824, %v827
        %830 = vbcast.lane.b32.xlu0 %v828, 256
        %v831 = vpop.permute.xlu0 %830
        %s833 = sor.u32 256, 8
        %834 = vbcast.lane.b32.xlu0 %v828, %s833
        %v835 = vpop.permute.xlu0 %834
        %s837 = sor.u32 256, 16
        %838 = vbcast.lane.b32.xlu0 %v828, %s837
        %v839 = vpop.permute.xlu0 %838
        %s841 = sor.u32 256, 24
        %842 = vbcast.lane.b32.xlu0 %v828, %s841
        %v843 = vpop.permute.xlu0 %842
        %s845 = sor.u32 256, 32
        %846 = vbcast.lane.b32.xlu0 %v828, %s845
        %v847 = vpop.permute.xlu0 %846
        %s849 = sor.u32 256, 40
        %850 = vbcast.lane.b32.xlu0 %v828, %s849
        %v851 = vpop.permute.xlu0 %850
        %s853 = sor.u32 256, 48
        %854 = vbcast.lane.b32.xlu0 %v828, %s853
        %v855 = vpop.permute.xlu0 %854
        %s857 = sor.u32 256, 56
        %858 = vbcast.lane.b32.xlu0 %v828, %s857
        %v859 = vpop.permute.xlu0 %858
        %s861 = sor.u32 256, 64
        %862 = vbcast.lane.b32.xlu0 %v828, %s861
        %v863 = vpop.permute.xlu0 %862
        %s865 = sor.u32 256, 72
        %866 = vbcast.lane.b32.xlu0 %v828, %s865
        %v867 = vpop.permute.xlu0 %866
        %s869 = sor.u32 256, 80
        %870 = vbcast.lane.b32.xlu0 %v828, %s869
        %v871 = vpop.permute.xlu0 %870
        %s873 = sor.u32 256, 88
        %874 = vbcast.lane.b32.xlu0 %v828, %s873
        %v875 = vpop.permute.xlu0 %874
        %s877 = sor.u32 256, 96
        %878 = vbcast.lane.b32.xlu0 %v828, %s877
        %v879 = vpop.permute.xlu0 %878
        %s881 = sor.u32 256, 104
        %882 = vbcast.lane.b32.xlu0 %v828, %s881
        %v883 = vpop.permute.xlu0 %882
        %s885 = sor.u32 256, 112
        %886 = vbcast.lane.b32.xlu0 %v828, %s885
        %v887 = vpop.permute.xlu0 %886
        %s889 = sor.u32 256, 120
        %890 = vbcast.lane.b32.xlu0 %v828, %s889
        %v891 = vpop.permute.xlu0 %890
        %v892 = vlaneseq
        %v893 = vshrl.u32 %v892, 7
        %v894 = vsub.s32 1, %v893
        %v895 = vrot.slane %v824, %v894
        %897 = vbcast.lane.b32.xlu0 %v895, 256
        %v898 = vpop.permute.xlu0 %897
        %s900 = sor.u32 256, 8
        %901 = vbcast.lane.b32.xlu0 %v895, %s900
        %v902 = vpop.permute.xlu0 %901
        %s904 = sor.u32 256, 16
        %905 = vbcast.lane.b32.xlu0 %v895, %s904
        %v906 = vpop.permute.xlu0 %905
        %s908 = sor.u32 256, 24
        %909 = vbcast.lane.b32.xlu0 %v895, %s908
        %v910 = vpop.permute.xlu0 %909
        %s912 = sor.u32 256, 32
        %913 = vbcast.lane.b32.xlu0 %v895, %s912
        %v914 = vpop.permute.xlu0 %913
        %s916 = sor.u32 256, 40
        %917 = vbcast.lane.b32.xlu0 %v895, %s916
        %v918 = vpop.permute.xlu0 %917
        %s920 = sor.u32 256, 48
        %921 = vbcast.lane.b32.xlu0 %v895, %s920
        %v922 = vpop.permute.xlu0 %921
        %s924 = sor.u32 256, 56
        %925 = vbcast.lane.b32.xlu0 %v895, %s924
        %v926 = vpop.permute.xlu0 %925
        %s928 = sor.u32 256, 64
        %929 = vbcast.lane.b32.xlu0 %v895, %s928
        %v930 = vpop.permute.xlu0 %929
        %s932 = sor.u32 256, 72
        %933 = vbcast.lane.b32.xlu0 %v895, %s932
        %v934 = vpop.permute.xlu0 %933
        %s936 = sor.u32 256, 80
        %937 = vbcast.lane.b32.xlu0 %v895, %s936
        %v938 = vpop.permute.xlu0 %937
        %s940 = sor.u32 256, 88
        %941 = vbcast.lane.b32.xlu0 %v895, %s940
        %v942 = vpop.permute.xlu0 %941
        %s944 = sor.u32 256, 96
        %945 = vbcast.lane.b32.xlu0 %v895, %s944
        %v946 = vpop.permute.xlu0 %945
        %s948 = sor.u32 256, 104
        %949 = vbcast.lane.b32.xlu0 %v895, %s948
        %v950 = vpop.permute.xlu0 %949
        %s952 = sor.u32 256, 112
        %953 = vbcast.lane.b32.xlu0 %v895, %s952
        %v954 = vpop.permute.xlu0 %953
        %s956 = sor.u32 256, 120
        %957 = vbcast.lane.b32.xlu0 %v895, %s956
        %v958 = vpop.permute.xlu0 %957
        %v959 = vmul.f32 %v192, %v831
        %v960 = vmul.f32 %v193, %v831
        %v961 = vmul.f32 %v194, %v835
        %v962 = vmul.f32 %v195, %v835
        %v963 = vmul.f32 %v196, %v839
        %v964 = vmul.f32 %v197, %v839
        %v965 = vmul.f32 %v198, %v843
        %v966 = vmul.f32 %v199, %v843
        %v967 = vmul.f32 %v200, %v847
        %v968 = vmul.f32 %v201, %v847
        %v969 = vmul.f32 %v202, %v851
        %v970 = vmul.f32 %v203, %v851
        %v971 = vmul.f32 %v204, %v855
        %v972 = vmul.f32 %v205, %v855
        %v973 = vmul.f32 %v206, %v859
        %v974 = vmul.f32 %v207, %v859
        %v975 = vmul.f32 %v208, %v863
        %v976 = vmul.f32 %v209, %v863
        %v977 = vmul.f32 %v210, %v867
        %v978 = vmul.f32 %v211, %v867
        %v979 = vmul.f32 %v212, %v871
        %v980 = vmul.f32 %v213, %v871
        %v981 = vmul.f32 %v214, %v875
        %v982 = vmul.f32 %v215, %v875
        %v983 = vmul.f32 %v216, %v879
        %v984 = vmul.f32 %v217, %v879
        %v985 = vmul.f32 %v218, %v883
        %v986 = vmul.f32 %v219, %v883
        %v987 = vmul.f32 %v220, %v887
        %v988 = vmul.f32 %v221, %v887
        %v989 = vmul.f32 %v222, %v891
        %v990 = vmul.f32 %v223, %v891
        %v991 = vmul.f32 %v224, %v898
        %v992 = vmul.f32 %v225, %v898
        %v993 = vmul.f32 %v226, %v902
        %v994 = vmul.f32 %v227, %v902
        %v995 = vmul.f32 %v228, %v906
        %v996 = vmul.f32 %v229, %v906
        %v997 = vmul.f32 %v230, %v910
        %v998 = vmul.f32 %v231, %v910
        %v999 = vmul.f32 %v232, %v914
        %v1000 = vmul.f32 %v233, %v914
        %v1001 = vmul.f32 %v234, %v918
        %v1002 = vmul.f32 %v235, %v918
        %v1003 = vmul.f32 %v236, %v922
        %v1004 = vmul.f32 %v237, %v922
        %v1005 = vmul.f32 %v238, %v926
        %v1006 = vmul.f32 %v239, %v926
        %v1007 = vmul.f32 %v240, %v930
        %v1008 = vmul.f32 %v241, %v930
        %v1009 = vmul.f32 %v242, %v934
        %v1010 = vmul.f32 %v243, %v934
        %v1011 = vmul.f32 %v244, %v938
        %v1012 = vmul.f32 %v245, %v938
        %v1013 = vmul.f32 %v246, %v942
        %v1014 = vmul.f32 %v247, %v942
        %v1015 = vmul.f32 %v248, %v946
        %v1016 = vmul.f32 %v249, %v946
        %v1017 = vmul.f32 %v250, %v950
        %v1018 = vmul.f32 %v251, %v950
        %v1019 = vmul.f32 %v252, %v954
        %v1020 = vmul.f32 %v253, %v954
        %v1021 = vmul.f32 %v254, %v958
        %v1022 = vmul.f32 %v255, %v958
        %1023 = vst [vmem:[%s189] sm:$0xff] %v959
        %1024 = vst [vmem:[%s189 + $0x8] sm:$0xff] %v960
        %1025 = vst [vmem:[%s189 + $0x10] sm:$0xff] %v961
        %1026 = vst [vmem:[%s189 + $0x18] sm:$0xff] %v962
        %1027 = vst [vmem:[%s189 + $0x20] sm:$0xff] %v963
        %1028 = vst [vmem:[%s189 + $0x28] sm:$0xff] %v964
        %1029 = vst [vmem:[%s189 + $0x30] sm:$0xff] %v965
        %1030 = vst [vmem:[%s189 + $0x38] sm:$0xff] %v966
        %1031 = vst [vmem:[%s189 + $0x40] sm:$0xff] %v967
        %1032 = vst [vmem:[%s189 + $0x48] sm:$0xff] %v968
        %1033 = vst [vmem:[%s189 + $0x50] sm:$0xff] %v969
        %1034 = vst [vmem:[%s189 + $0x58] sm:$0xff] %v970
        %1035 = vst [vmem:[%s189 + $0x60] sm:$0xff] %v971
        %1036 = vst [vmem:[%s189 + $0x68] sm:$0xff] %v972
        %1037 = vst [vmem:[%s189 + $0x70] sm:$0xff] %v973
        %1038 = vst [vmem:[%s189 + $0x78] sm:$0xff] %v974
        %1039 = vst [vmem:[%s189 + $0x80] sm:$0xff] %v975
        %1040 = vst [vmem:[%s189 + $0x88] sm:$0xff] %v976
        %1041 = vst [vmem:[%s189 + $0x90] sm:$0xff] %v977
        %1042 = vst [vmem:[%s189 + $0x98] sm:$0xff] %v978
        %1043 = vst [vmem:[%s189 + $0xa0] sm:$0xff] %v979
        %1044 = vst [vmem:[%s189 + $0xa8] sm:$0xff] %v980
        %1045 = vst [vmem:[%s189 + $0xb0] sm:$0xff] %v981
        %1046 = vst [vmem:[%s189 + $0xb8] sm:$0xff] %v982
        %1047 = vst [vmem:[%s189 + $0xc0] sm:$0xff] %v983
        %1048 = vst [vmem:[%s189 + $0xc8] sm:$0xff] %v984
        %1049 = vst [vmem:[%s189 + $0xd0] sm:$0xff] %v985
        %1050 = vst [vmem:[%s189 + $0xd8] sm:$0xff] %v986
        %1051 = vst [vmem:[%s189 + $0xe0] sm:$0xff] %v987
        %1052 = vst [vmem:[%s189 + $0xe8] sm:$0xff] %v988
        %1053 = vst [vmem:[%s189 + $0xf0] sm:$0xff] %v989
        %1054 = vst [vmem:[%s189 + $0xf8] sm:$0xff] %v990
        %1055 = vst [vmem:[%s189 + $0x100] sm:$0xff] %v991
        %1056 = vst [vmem:[%s189 + $0x108] sm:$0xff] %v992
        %1057 = vst [vmem:[%s189 + $0x110] sm:$0xff] %v993
        %1058 = vst [vmem:[%s189 + $0x118] sm:$0xff] %v994
        %1059 = vst [vmem:[%s189 + $0x120] sm:$0xff] %v995
        %1060 = vst [vmem:[%s189 + $0x128] sm:$0xff] %v996
        %1061 = vst [vmem:[%s189 + $0x130] sm:$0xff] %v997
        %1062 = vst [vmem:[%s189 + $0x138] sm:$0xff] %v998
        %1063 = vst [vmem:[%s189 + $0x140] sm:$0xff] %v999
        %1064 = vst [vmem:[%s189 + $0x148] sm:$0xff] %v1000
        %1065 = vst [vmem:[%s189 + $0x150] sm:$0xff] %v1001
        %1066 = vst [vmem:[%s189 + $0x158] sm:$0xff] %v1002
        %1067 = vst [vmem:[%s189 + $0x160] sm:$0xff] %v1003
        %1068 = vst [vmem:[%s189 + $0x168] sm:$0xff] %v1004
        %1069 = vst [vmem:[%s189 + $0x170] sm:$0xff] %v1005
        %1070 = vst [vmem:[%s189 + $0x178] sm:$0xff] %v1006
        %1071 = vst [vmem:[%s189 + $0x180] sm:$0xff] %v1007
        %1072 = vst [vmem:[%s189 + $0x188] sm:$0xff] %v1008
        %1073 = vst [vmem:[%s189 + $0x190] sm:$0xff] %v1009
        %1074 = vst [vmem:[%s189 + $0x198] sm:$0xff] %v1010
        %1075 = vst [vmem:[%s189 + $0x1a0] sm:$0xff] %v1011
        %1076 = vst [vmem:[%s189 + $0x1a8] sm:$0xff] %v1012
        %1077 = vst [vmem:[%s189 + $0x1b0] sm:$0xff] %v1013
        %1078 = vst [vmem:[%s189 + $0x1b8] sm:$0xff] %v1014
        %1079 = vst [vmem:[%s189 + $0x1c0] sm:$0xff] %v1015
        %1080 = vst [vmem:[%s189 + $0x1c8] sm:$0xff] %v1016
        %1081 = vst [vmem:[%s189 + $0x1d0] sm:$0xff] %v1017
        %1082 = vst [vmem:[%s189 + $0x1d8] sm:$0xff] %v1018
        %1083 = vst [vmem:[%s189 + $0x1e0] sm:$0xff] %v1019
        %1084 = vst [vmem:[%s189 + $0x1e8] sm:$0xff] %v1020
        %1085 = vst [vmem:[%s189 + $0x1f0] sm:$0xff] %v1021
        %1086 = vst [vmem:[%s189 + $0x1f8] sm:$0xff] %v1022
        %s1087 = sand.u32 %s96, 1
        %s1088 = scalar_lea.sflag [#allocation4], %s1087
        %s1089 = sand.u32 %s96, 1
        %s1090 = smul.addr %s1089, 512
        %s1091 = scalar_lea.vmem [#allocation5], %s1090
        // Predicated region
        $region37: #{tpu_custom_call.1} parent=31 // pred_check
          %p1092 = pneg %p106
        $region38: #{tpu_custom_call.1} parent=31 // pred_check_branch
          %1094 = sbr.rel (%p1092) target = $region40
        $region39: #{tpu_custom_call.1} parent=31 // pred_region
          %s1095 = smul.u32 2, %s20
          %s1097 = ssub.s32 8192, 8192
          %1098 = vsyncadd %s1088, %s1097
          %s1099 = smul.addr %s1095, 32
          %s1100 = smul.addr %s1099, 128
          %s1101 = scalar_lea.hbm %s3, %s1100
          %s1102 = sshll.u32 %s1091, 4
          %s1103 = int_to_ptr.vmem [resolvable:$true] %s1102
          %1108 = dma.vmem_to_hbm [thread:$0]  %s1103, 8192, %s1101, %s1088, 256, 256, 16
        $region40: #{tpu_custom_call.1} parent=31 // pred_fallthru
          _
      $region32: #{tpu_custom_call.1} parent=5 // pred_fallthru
        _
      %p1109 = scmp.le.s32.totalorder 2, %s15
      // Predicated region
      $region41: #{tpu_custom_call.1} parent=5 // pred_check
        %p1110 = pneg %p1109
      $region42: #{tpu_custom_call.1} parent=5 // pred_check_branch
        %1112 = sbr.rel (%p1110) target = $region44
      $region43: #{tpu_custom_call.1} parent=5 // pred_region
        %s1113 = ssub.s32 %s15, 2
        // Predicated region
        $region45: #{tpu_custom_call.1} parent=43 // pred_check
          %p1114 = pneg %p112
        $region46: #{tpu_custom_call.1} parent=43 // pred_check_branch
          %1116 = sbr.rel (%p1114) target = $region48
        $region47: #{tpu_custom_call.1} parent=43 // pred_region
          %s1117 = sand.u32 %s97, 1
          %s1118 = scalar_lea.sflag [#allocation4], %s1117
          %s1119 = sand.u32 %s97, 1
          %s1120 = smul.addr %s1119, 512
          %s1121 = scalar_lea.vmem [#allocation5], %s1120
          %1122 = dma.done %s1118, 8192
        $region48: #{tpu_custom_call.1} parent=43 // pred_fallthru
          _
      $region44: #{tpu_custom_call.1} parent=5 // pred_fallthru
        _
    $region6: #{tpu_custom_call.1} parent=1 // loop_footer
      %s19 = sadd.s32 1, %s15
    $region7: #{tpu_custom_call.1} parent=1 // loop_footer_branch
      %14 = sbr.rel target = $region3
    $region8: #{tpu_custom_call.1} parent=1 // loop_exit
      _
    %1123 = vsyncpa [#allocation3], 1
    %s1124 = scalar_lea.sflag [#allocation3], 1
    %1125 = vsyncpa %s1124, 1
    %1126 = vsyncpa [#allocation4], 1
    %s1127 = scalar_lea.sflag [#allocation4], 1
    %1128 = vsyncpa %s1127, 1

</llo_original>
